<compile_context>
chip_gen: v6e
topology: v6e:2x2x1
jax: 0.10.0
libtpu: 0.0.40
codegen_flags: <defaults>
</compile_context>

<pallas_src>
import jax
import jax.numpy as jnp
from jax import lax
from jax.experimental import pallas as pl
from jax.experimental.pallas import tpu as pltpu


def _round_up(x, m):
    return (x + m - 1) // m * m


def mlp_kernel(x_ref, w1_ref, b1_ref, w2t_ref, b2t_ref, o_ref):
    # ---- Linear 1: bf16 MXU inputs, f32 accumulation -----------------------
    # x tile arrives as f32 straight from HBM; cast on the VPU just before the
    # MXU (the VPU has slack — this kernel is HBM-bound).
    x = x_ref[...].astype(w1_ref.dtype)                                # (tb, in) bf16
    h = jnp.dot(x, w1_ref[...], preferred_element_type=jnp.float32)   # (tb, hidden) f32
    h = h + b1_ref[...]                                                # (1, hidden) f32
    # ---- LeakyReLU (PyTorch default negative_slope = 0.01) -----------------
    h = jnp.maximum(h, 0.01 * h)
    # ---- Dropout: eval-mode identity ----------------------------------------
    # TODO(synk): training-mode dropout (pltpu.prng_seed / prng_random_bits
    #             mask + 1/(1-p) rescale) is not wired in.
    # ---- Linear 2 (classifier), emitted transposed --------------------------
    # out^T (out_pad8, tb) = W2^T (out_pad8, hidden) . h (tb, hidden), both
    # contracting the hidden dim — no in-kernel transpose needed. Kept in f32
    # for closer parity with PyTorch's f32 Linear (tiny matmul, free here).
    out_t = lax.dot_general(
        w2t_ref[...], h,
        dimension_numbers=(((1,), (1,)), ((), ())),
        preferred_element_type=jnp.float32)                            # (out_pad8, tb)
    o_ref[...] = (out_t + b2t_ref[...]).astype(o_ref.dtype)


def prepare_params(w1, b1, w2, b2, compute_dtype=jnp.bfloat16):
    """One-time weight prep (hoisted out of the per-call path).

    w1: [input_dim, hidden]  b1: [hidden] or [1, hidden]
    w2: [hidden, out_dim]    b2: [out_dim] or [1, out_dim]
    Returns (w1_bf16, b1_f32[1,h], w2T_pad_f32[out_pad8,h], b2T_pad_f32[out_pad8,1], out_dim).
    """
    hidden_dim, out_dim = w2.shape
    out_pad = _round_up(out_dim, 8)            # classifier width padded to 8 sublanes
    w1_c = w1.astype(compute_dtype)
    b1_f = b1.reshape(1, hidden_dim).astype(jnp.float32)
    w2_t = jnp.zeros((out_pad, hidden_dim), jnp.float32).at[:out_dim, :].set(
        w2.astype(jnp.float32).T)
    b2_t = jnp.zeros((out_pad, 1), jnp.float32).at[:out_dim, 0].set(
        b2.reshape(-1).astype(jnp.float32))
    return w1_c, b1_f, w2_t, b2_t, out_dim


def _choose_tiling(B, tile_b_max=2048):
    """Adaptive batch tile: tb multiple of 8, minimal padding, and >=2 grid
    steps once the batch is big enough (so v7x's two TensorCores both engage)."""
    bp8 = _round_up(B, 8)
    n_tiles = max(1 if bp8 < 128 else 2, pl.cdiv(bp8, tile_b_max))
    tb = _round_up(pl.cdiv(bp8, n_tiles), 8)
    return tb, n_tiles * tb, n_tiles


def mlp_classifier_forward(x, params, *, tile_b=2048):
    """x: [B, input_dim] f32, params from prepare_params -> logits [B, out_dim] f32."""
    w1_c, b1_f, w2_t, b2_t, out_dim = params
    B, input_dim = x.shape
    hidden_dim = w1_c.shape[1]
    out_pad = w2_t.shape[0]

    tb, b_pad, n_tiles = _choose_tiling(B, tile_b)
    if b_pad != B:
        x = jnp.pad(x, ((0, b_pad - B), (0, 0)))

    cost = pl.CostEstimate(
        flops=2 * b_pad * hidden_dim * (input_dim + out_pad),
        transcendentals=0,
        bytes_accessed=(b_pad * input_dim * 4            # x (f32, read once)
                        + input_dim * hidden_dim * 2     # W1 bf16
                        + hidden_dim * out_pad * 4       # W2^T f32
                        + b_pad * out_pad * 4),          # transposed logits out
    )

    # Per-step VMEM (double-buffered x tile + output tile + resident weights)
    # is ~12.5 MiB at tb=2048 — under the 32 MiB scoped default on all gens.
    out_t = pl.pallas_call(
        mlp_kernel,
        out_shape=jax.ShapeDtypeStruct((n_tiles, out_pad, tb), jnp.float32),
        grid=(n_tiles,),
        in_specs=[
            pl.BlockSpec((tb, input_dim), lambda i: (i, 0)),           # x tile (f32)
            pl.BlockSpec((input_dim, hidden_dim), lambda i: (0, 0)),   # W1 resident (bf16)
            pl.BlockSpec((1, hidden_dim), lambda i: (0, 0)),           # b1 resident (f32)
            pl.BlockSpec((out_pad, hidden_dim), lambda i: (0, 0)),     # W2^T resident (f32)
            pl.BlockSpec((out_pad, 1), lambda i: (0, 0)),              # b2^T resident (f32)
        ],
        out_specs=pl.BlockSpec((None, out_pad, tb), lambda i: (i, 0, 0)),
        compiler_params=pltpu.CompilerParams(
            dimension_semantics=("parallel",)),
        cost_estimate=cost,
    )(x, w1_c, b1_f, w2_t, b2_t)

    # (n_tiles, out_pad, tb) -> (b_pad, out_pad) -> (B, out_dim); tiny arrays.
    logits = jnp.transpose(out_t, (0, 2, 1)).reshape(b_pad, out_pad)
    return logits[:B, :out_dim]


def init_params(key, input_dim=728, hidden_dim=128, output_size=2):
    """Deterministic init mimicking PyTorch nn.Linear defaults (uniform +/-1/sqrt(fan_in)).

    Weights are stored transposed vs PyTorch: W1 [input_dim, hidden], W2 [hidden, out].
    """
    k1, k2, k3, k4 = jax.random.split(key, 4)
    bound1 = 1.0 / (input_dim ** 0.5)
    bound2 = 1.0 / (hidden_dim ** 0.5)
    w1 = jax.random.uniform(k1, (input_dim, hidden_dim), jnp.float32, -bound1, bound1)
    b1 = jax.random.uniform(k2, (1, hidden_dim), jnp.float32, -bound1, bound1)
    w2 = jax.random.uniform(k3, (hidden_dim, output_size), jnp.float32, -bound2, bound2)
    b2 = jax.random.uniform(k4, (1, output_size), jnp.float32, -bound2, bound2)
    return w1, b1, w2, b2


if __name__ == "__main__":
    key = jax.random.PRNGKey(0)
    k_x, k_p = jax.random.split(key)

    batch = 8
    input_dim, hidden_dim, output_size = 728, 128, 2

    x = jax.random.normal(k_x, (batch, input_dim), jnp.float32)
    w1, b1, w2, b2 = init_params(k_p, input_dim, hidden_dim, output_size)

    params = prepare_params(w1, b1, w2, b2)   # one-time weight prep (static weights)
    out = mlp_classifier_forward(x, params)
    out = jax.block_until_ready(out)
    assert out.shape == (batch, output_size)

    # Reference in plain JAX with the same numeric recipe: bf16 MXU inputs for
    # the first layer, f32 accumulate / elementwise, f32 classifier matmul
    # (eval-mode dropout == identity).
    h_ref = jnp.dot(x.astype(jnp.bfloat16), w1.astype(jnp.bfloat16),
                    preferred_element_type=jnp.float32) + b1
    h_ref = jnp.maximum(h_ref, 0.01 * h_ref)
    ref = jnp.dot(h_ref, w2, preferred_element_type=jnp.float32) + b2
    err = jnp.max(jnp.abs(out - ref))
    assert jnp.allclose(out, ref, atol=2e-2, rtol=2e-2), f"max abs err {err}"

    print("KERNEL_OK")
</pallas_src>

<mosaic_0001>
module attributes {stable_mosaic.version = 11 : i64} {
  func.func @mlp_kernel(%arg0: i32, %arg1: memref<8x728xf32, #tpu.memory_space<vmem>>, %arg2: memref<728x128xbf16, #tpu.memory_space<vmem>>, %arg3: memref<1x128xf32, #tpu.memory_space<vmem>>, %arg4: memref<8x128xf32, #tpu.memory_space<vmem>>, %arg5: memref<8x1xf32, #tpu.memory_space<vmem>>, %arg6: memref<1x8x8xf32, #tpu.memory_space<vmem>>) attributes {dimension_semantics = [#tpu.dimension_semantics<parallel>], iteration_bounds = array<i64: 1>, scalar_prefetch = 0 : i64, scratch_operands = 0 : i64, tpu.core_type = #tpu.core_type<tc>, window_params = [{transform_indices = @transform_0, window_bounds = array<i64: 8, 728>}, {pipeline_mode = #tpu.pipeline_mode<synchronous>, transform_indices = @transform_1, window_bounds = array<i64: 728, 128>}, {pipeline_mode = #tpu.pipeline_mode<synchronous>, transform_indices = @transform_2, window_bounds = array<i64: 1, 128>}, {pipeline_mode = #tpu.pipeline_mode<synchronous>, transform_indices = @transform_3, window_bounds = array<i64: 8, 128>}, {pipeline_mode = #tpu.pipeline_mode<synchronous>, transform_indices = @transform_4, window_bounds = array<i64: 8, 1>}, {transform_indices = @transform_5, window_bounds = array<i64: 1, 8, 8>}]} {
    %c0 = arith.constant 0 : index
    %c0_0 = arith.constant 0 : index
    %0 = vector.load %arg1[%c0, %c0_0] : memref<8x728xf32, #tpu.memory_space<vmem>>, vector<8x728xf32>
    %1 = arith.truncf %0 : vector<8x728xf32> to vector<8x728xbf16>
    %c0_1 = arith.constant 0 : index
    %c0_2 = arith.constant 0 : index
    %2 = vector.load %arg2[%c0_1, %c0_2] : memref<728x128xbf16, #tpu.memory_space<vmem>>, vector<728x128xbf16>
    %cst = arith.constant dense<0.000000e+00> : vector<8x128xf32>
    %3 = tpu.matmul %1, %2, %cst {dimension_numbers = #tpu.dot_dimension_numbers<[1], [0], [0], [1], [0, 0, 1, 1], [], []>} : vector<8x728xbf16>, vector<728x128xbf16>, vector<8x128xf32> -> vector<8x128xf32>
    %c0_3 = arith.constant 0 : index
    %c0_4 = arith.constant 0 : index
    %4 = vector.load %arg3[%c0_3, %c0_4] : memref<1x128xf32, #tpu.memory_space<vmem>>, vector<1x128xf32>
    %5 = vector.broadcast %4 : vector<1x128xf32> to vector<8x128xf32>
    %6 = arith.addf %3, %5 : vector<8x128xf32>
    %cst_5 = arith.constant 0.00999999977 : f32
    %7 = vector.broadcast %cst_5 : f32 to vector<8x128xf32>
    %8 = arith.mulf %7, %6 : vector<8x128xf32>
    %9 = arith.maximumf %6, %8 : vector<8x128xf32>
    %c0_6 = arith.constant 0 : index
    %c0_7 = arith.constant 0 : index
    %10 = vector.load %arg4[%c0_6, %c0_7] : memref<8x128xf32, #tpu.memory_space<vmem>>, vector<8x128xf32>
    %cst_8 = arith.constant dense<0.000000e+00> : vector<8x8xf32>
    %11 = tpu.matmul %10, %9, %cst_8 {dimension_numbers = #tpu.dot_dimension_numbers<[1], [1], [0], [0], [0, 0, 1, 0], [], []>} : vector<8x128xf32>, vector<8x128xf32>, vector<8x8xf32> -> vector<8x8xf32>
    %c0_9 = arith.constant 0 : index
    %c0_10 = arith.constant 0 : index
    %12 = vector.load %arg5[%c0_9, %c0_10] : memref<8x1xf32, #tpu.memory_space<vmem>>, vector<8x1xf32>
    %13 = vector.broadcast %12 : vector<8x1xf32> to vector<8x8xf32>
    %14 = arith.addf %11, %13 : vector<8x8xf32>
    %c0_11 = arith.constant 0 : index
    %c0_12 = arith.constant 0 : index
    %c0_13 = arith.constant 0 : index
    %15 = vector.load %arg6[%c0_11, %c0_12, %c0_13] : memref<1x8x8xf32, #tpu.memory_space<vmem>>, vector<1x8x8xf32>
    %16 = vector.shape_cast %15 : vector<1x8x8xf32> to vector<8x8xf32>
    %17 = vector.shape_cast %14 : vector<8x8xf32> to vector<1x8x8xf32>
    tpu.vector_store %arg6[%c0_11, %c0_12, %c0_13], %17 {strides = array<i32>} : memref<1x8x8xf32, #tpu.memory_space<vmem>>, vector<1x8x8xf32>,
    return
  }
  func.func @transform_0(%arg0: i32) -> (i32, i32) {
    %c0_i32 = arith.constant 0 : i32
    %c0_i32_0 = arith.constant 0 : i32
    return %arg0, %c0_i32 : i32, i32
  }
  func.func @transform_1(%arg0: i32) -> (i32, i32) {
    %c0_i32 = arith.constant 0 : i32
    %c0_i32_0 = arith.constant 0 : i32
    %c0_i32_1 = arith.constant 0 : i32
    return %c0_i32, %c0_i32_0 : i32, i32
  }
  func.func @transform_2(%arg0: i32) -> (i32, i32) {
    %c0_i32 = arith.constant 0 : i32
    %c0_i32_0 = arith.constant 0 : i32
    %c0_i32_1 = arith.constant 0 : i32
    return %c0_i32, %c0_i32_0 : i32, i32
  }
  func.func @transform_3(%arg0: i32) -> (i32, i32) {
    %c0_i32 = arith.constant 0 : i32
    %c0_i32_0 = arith.constant 0 : i32
    %c0_i32_1 = arith.constant 0 : i32
    return %c0_i32, %c0_i32_0 : i32, i32
  }
  func.func @transform_4(%arg0: i32) -> (i32, i32) {
    %c0_i32 = arith.constant 0 : i32
    %c0_i32_0 = arith.constant 0 : i32
    %c0_i32_1 = arith.constant 0 : i32
    return %c0_i32, %c0_i32_0 : i32, i32
  }
  func.func @transform_5(%arg0: i32) -> (i32, i32, i32) {
    %c0_i32 = arith.constant 0 : i32
    %c0_i32_0 = arith.constant 0 : i32
    %c0_i32_1 = arith.constant 0 : i32
    return %arg0, %c0_i32, %c0_i32_0 : i32, i32, i32
  }
}

</mosaic_0001>

<llo_original>
// kernel: tpu_custom_call.1
$region0: #{tpu_custom_call.1}
  #allocation0 [shape = 'u32[]', space=smem, size = 0x4, offset = 0x4, fixed_abs, tag = 'smem constant byte address 0x4 - core index']
  #allocation1 [shape = 'u32[144,128]{1,0:T(1,128)}', space=vmem, size = 0x12000, scoped, tag = 'internal scratch']
  %s0 = inlined_call_operand.hbm [shape: f32[8,728], index: 0, kind: input, shape index: {}]
  %s1 = inlined_call_operand.hbm [shape: bf16[728,128], index: 1, kind: input, shape index: {}]
  %s2 = inlined_call_operand.vmem [shape: f32[1,128], index: 2, kind: input, shape index: {}]
  %s3 = inlined_call_operand.vmem [shape: f32[8,128], index: 3, kind: input, shape index: {}]
  %s4 = inlined_call_operand.vmem [shape: f32[8,1], index: 4, kind: input, shape index: {}]
  %s5 = inlined_call_operand.hbm [shape: f32[1,8,8], index: 5, kind: output, shape index: {}]
  %s6 = sld [smem:[#allocation0]]
  $region38: #{tpu_custom_call.1} parent=0
    _
  %s8 = ssub.s32 1, %s6
  %s9 = scalar_select 0, %s8, %s6
  $region1: #{tpu_custom_call.1} parent=0
    #allocation2 [shape = 'u8[24576]{0}', space=vmem, size = 0x6000, scoped, tag = 'input window, operand 0, single buffered']
    #allocation3 [shape = 's32[1]{0}', space=sflag, size = 0x4, scoped, tag = 'scoped memory for tpu_custom_call.1']
    #allocation4 [shape = 's32[1]{0}', space=sflag, size = 0x4, scoped, tag = 'scoped memory for tpu_custom_call.1']
    #allocation5 [shape = 'u8[186368]{0}', space=vmem, size = 0x2d800, scoped, tag = 'input window, operand 1, single buffered']
    #allocation6 [shape = 's32[1]{0}', space=sflag, size = 0x4, scoped, tag = 'scoped memory for tpu_custom_call.1']
    #allocation7 [shape = 'u8[4096]{0}', space=vmem, size = 0x1000, scoped, tag = 'output window, operand 0, single buffered']
    %10 = vsyncpa [#allocation3], 0
    %11 = vsyncpa [#allocation6], 0
    %12 = vsyncpa [#allocation4], 0
    // Predicated region
    $region2: #{tpu_custom_call.1} parent=1 // pred_check
      _
    $region3: #{tpu_custom_call.1} parent=1 // pred_check_branch
      %14 = sbr.rel (0) target = $region5
    $region4: #{tpu_custom_call.1} parent=1 // pred_region
      %s16 = ssub.s32 768, 768
      %17 = vsyncadd [#allocation3], %s16
      %s19 = sshll.u32 [#allocation2], 4
      %s20 = int_to_ptr.vmem [resolvable:$true] %s19
      %22 = dma.hbm_to_vmem [thread:$0]  %s0, 768, %s20, [#allocation3]
    $region5: #{tpu_custom_call.1} parent=1 // pred_fallthru
      _
    // Predicated region
    $region6: #{tpu_custom_call.1} parent=1 // pred_check
      _
    $region7: #{tpu_custom_call.1} parent=1 // pred_check_branch
      %24 = sbr.rel (0) target = $region9
    $region8: #{tpu_custom_call.1} parent=1 // pred_region
      %s26 = ssub.s32 5824, 5824
      %27 = vsyncadd [#allocation6], %s26
      %s28 = sshll.u32 [#allocation5], 4
      %s29 = int_to_ptr.vmem [resolvable:$true] %s28
      %34 = dma.hbm_to_vmem [thread:$0]  %s1, 5824, %s29, [#allocation6], 64, 64, 4
    $region9: #{tpu_custom_call.1} parent=1 // pred_fallthru
      _
    // Predicated region
    $region10: #{tpu_custom_call.1} parent=1 // pred_check
      _
    $region11: #{tpu_custom_call.1} parent=1 // pred_check_branch
      %36 = sbr.rel (0) target = $region13
    $region12: #{tpu_custom_call.1} parent=1 // pred_region
      _
    $region13: #{tpu_custom_call.1} parent=1 // pred_fallthru
      _
    // Predicated region
    $region14: #{tpu_custom_call.1} parent=1 // pred_check
      _
    $region15: #{tpu_custom_call.1} parent=1 // pred_check_branch
      %38 = sbr.rel (0) target = $region17
    $region16: #{tpu_custom_call.1} parent=1 // pred_region
      _
    $region17: #{tpu_custom_call.1} parent=1 // pred_fallthru
      _
    // Predicated region
    $region18: #{tpu_custom_call.1} parent=1 // pred_check
      _
    $region19: #{tpu_custom_call.1} parent=1 // pred_check_branch
      %40 = sbr.rel (0) target = $region21
    $region20: #{tpu_custom_call.1} parent=1 // pred_region
      _
    $region21: #{tpu_custom_call.1} parent=1 // pred_fallthru
      _
    // Predicated region
    $region22: #{tpu_custom_call.1} parent=1 // pred_check
      _
    $region23: #{tpu_custom_call.1} parent=1 // pred_check_branch
      %42 = sbr.rel (0) target = $region25
    $region24: #{tpu_custom_call.1} parent=1 // pred_region
      %43 = dma.done [#allocation3], 768
    $region25: #{tpu_custom_call.1} parent=1 // pred_fallthru
      _
    // Predicated region
    $region26: #{tpu_custom_call.1} parent=1 // pred_check
      _
    $region27: #{tpu_custom_call.1} parent=1 // pred_check_branch
      %45 = sbr.rel (0) target = $region29
    $region28: #{tpu_custom_call.1} parent=1 // pred_region
      %46 = dma.done [#allocation6], 5824
    $region29: #{tpu_custom_call.1} parent=1 // pred_fallthru
      _
    %v48 = vld [vmem:[#allocation2] sm:$0xff]
    %v49 = vld [vmem:[#allocation2 + $0x8] sm:$0xff]
    %v50 = vld [vmem:[#allocation2 + $0x10] sm:$0xff]
    %v51 = vld [vmem:[#allocation2 + $0x18] sm:$0xff]
    %v52 = vld [vmem:[#allocation2 + $0x20] sm:$0xff]
    %v53 = vld [vmem:[#allocation2 + $0x28] sm:$0xff]
    %v54 = vpack.c.bf16 %v48, %v48
    %v55 = vpack.c.bf16 %v49, %v49
    %v56 = vpack.c.bf16 %v50, %v50
    %v57 = vpack.c.bf16 %v51, %v51
    %v58 = vpack.c.bf16 %v52, %v52
    %v59 = vpack.c.bf16 %v53, %v53
    %v60 = vld [vmem:[#allocation5] sm:$0xf]
    %v61 = vld [vmem:[#allocation5 + $0x4] sm:$0xf]
    %v62 = vld [vmem:[#allocation5 + $0x8] sm:$0xf]
    %v63 = vld [vmem:[#allocation5 + $0xc] sm:$0xf]
    %v64 = vld [vmem:[#allocation5 + $0x10] sm:$0xf]
    %v65 = vld [vmem:[#allocation5 + $0x14] sm:$0xf]
    %v66 = vld [vmem:[#allocation5 + $0x18] sm:$0xf]
    %v67 = vld [vmem:[#allocation5 + $0x1c] sm:$0xf]
    %v68 = vld [vmem:[#allocation5 + $0x20] sm:$0xf]
    %v69 = vld [vmem:[#allocation5 + $0x24] sm:$0xf]
    %v70 = vld [vmem:[#allocation5 + $0x28] sm:$0xf]
    %v71 = vld [vmem:[#allocation5 + $0x2c] sm:$0xf]
    %v72 = vld [vmem:[#allocation5 + $0x30] sm:$0xf]
    %v73 = vld [vmem:[#allocation5 + $0x34] sm:$0xf]
    %v74 = vld [vmem:[#allocation5 + $0x38] sm:$0xf]
    %v75 = vld [vmem:[#allocation5 + $0x3c] sm:$0xf]
    %v76 = vld [vmem:[#allocation5 + $0x40] sm:$0xf]
    %v77 = vld [vmem:[#allocation5 + $0x44] sm:$0xf]
    %v78 = vld [vmem:[#allocation5 + $0x48] sm:$0xf]
    %v79 = vld [vmem:[#allocation5 + $0x4c] sm:$0xf]
    %v80 = vld [vmem:[#allocation5 + $0x50] sm:$0xf]
    %v81 = vld [vmem:[#allocation5 + $0x54] sm:$0xf]
    %v82 = vld [vmem:[#allocation5 + $0x58] sm:$0xf]
    %v83 = vld [vmem:[#allocation5 + $0x5c] sm:$0xf]
    %v84 = vld [vmem:[#allocation5 + $0x60] sm:$0xf]
    %v85 = vld [vmem:[#allocation5 + $0x64] sm:$0xf]
    %v86 = vld [vmem:[#allocation5 + $0x68] sm:$0xf]
    %v87 = vld [vmem:[#allocation5 + $0x6c] sm:$0xf]
    %v88 = vld [vmem:[#allocation5 + $0x70] sm:$0xf]
    %v89 = vld [vmem:[#allocation5 + $0x74] sm:$0xf]
    %v90 = vld [vmem:[#allocation5 + $0x78] sm:$0xf]
    %v91 = vld [vmem:[#allocation5 + $0x7c] sm:$0xf]
    %v92 = vld [vmem:[#allocation5 + $0x80] sm:$0xf]
    %v93 = vld [vmem:[#allocation5 + $0x84] sm:$0xf]
    %v94 = vld [vmem:[#allocation5 + $0x88] sm:$0xf]
    %v95 = vld [vmem:[#allocation5 + $0x8c] sm:$0xf]
    %v96 = vld [vmem:[#allocation5 + $0x90] sm:$0xf]
    %v97 = vld [vmem:[#allocation5 + $0x94] sm:$0xf]
    %v98 = vld [vmem:[#allocation5 + $0x98] sm:$0xf]
    %v99 = vld [vmem:[#allocation5 + $0x9c] sm:$0xf]
    %v100 = vld [vmem:[#allocation5 + $0xa0] sm:$0xf]
    %v101 = vld [vmem:[#allocation5 + $0xa4] sm:$0xf]
    %v102 = vld [vmem:[#allocation5 + $0xa8] sm:$0xf]
    %v103 = vld [vmem:[#allocation5 + $0xac] sm:$0xf]
    %v104 = vld [vmem:[#allocation5 + $0xb0] sm:$0xf]
    %v105 = vld [vmem:[#allocation5 + $0xb4] sm:$0xf]
    %v106 = vld [vmem:[#allocation5 + $0xb8] sm:$0xf]
    %v107 = vld [vmem:[#allocation5 + $0xbc] sm:$0xf]
    %v108 = vld [vmem:[#allocation5 + $0xc0] sm:$0xf]
    %v109 = vld [vmem:[#allocation5 + $0xc4] sm:$0xf]
    %v110 = vld [vmem:[#allocation5 + $0xc8] sm:$0xf]
    %v111 = vld [vmem:[#allocation5 + $0xcc] sm:$0xf]
    %v112 = vld [vmem:[#allocation5 + $0xd0] sm:$0xf]
    %v113 = vld [vmem:[#allocation5 + $0xd4] sm:$0xf]
    %v114 = vld [vmem:[#allocation5 + $0xd8] sm:$0xf]
    %v115 = vld [vmem:[#allocation5 + $0xdc] sm:$0xf]
    %v116 = vld [vmem:[#allocation5 + $0xe0] sm:$0xf]
    %v117 = vld [vmem:[#allocation5 + $0xe4] sm:$0xf]
    %v118 = vld [vmem:[#allocation5 + $0xe8] sm:$0xf]
    %v119 = vld [vmem:[#allocation5 + $0xec] sm:$0xf]
    %v120 = vld [vmem:[#allocation5 + $0xf0] sm:$0xf]
    %v121 = vld [vmem:[#allocation5 + $0xf4] sm:$0xf]
    %v122 = vld [vmem:[#allocation5 + $0xf8] sm:$0xf]
    %v123 = vld [vmem:[#allocation5 + $0xfc] sm:$0xf]
    %v124 = vld [vmem:[#allocation5 + $0x100] sm:$0xf]
    %v125 = vld [vmem:[#allocation5 + $0x104] sm:$0xf]
    %v126 = vld [vmem:[#allocation5 + $0x108] sm:$0xf]
    %v127 = vld [vmem:[#allocation5 + $0x10c] sm:$0xf]
    %v128 = vld [vmem:[#allocation5 + $0x110] sm:$0xf]
    %v129 = vld [vmem:[#allocation5 + $0x114] sm:$0xf]
    %v130 = vld [vmem:[#allocation5 + $0x118] sm:$0xf]
    %v131 = vld [vmem:[#allocation5 + $0x11c] sm:$0xf]
    %v132 = vld [vmem:[#allocation5 + $0x120] sm:$0xf]
    %v133 = vld [vmem:[#allocation5 + $0x124] sm:$0xf]
    %v134 = vld [vmem:[#allocation5 + $0x128] sm:$0xf]
    %v135 = vld [vmem:[#allocation5 + $0x12c] sm:$0xf]
    %v136 = vld [vmem:[#allocation5 + $0x130] sm:$0xf]
    %v137 = vld [vmem:[#allocation5 + $0x134] sm:$0xf]
    %v138 = vld [vmem:[#allocation5 + $0x138] sm:$0xf]
    %v139 = vld [vmem:[#allocation5 + $0x13c] sm:$0xf]
    %v140 = vld [vmem:[#allocation5 + $0x140] sm:$0xf]
    %v141 = vld [vmem:[#allocation5 + $0x144] sm:$0xf]
    %v142 = vld [vmem:[#allocation5 + $0x148] sm:$0xf]
    %v143 = vld [vmem:[#allocation5 + $0x14c] sm:$0xf]
    %v144 = vld [vmem:[#allocation5 + $0x150] sm:$0xf]
    %v145 = vld [vmem:[#allocation5 + $0x154] sm:$0xf]
    %v146 = vld [vmem:[#allocation5 + $0x158] sm:$0xf]
    %v147 = vld [vmem:[#allocation5 + $0x15c] sm:$0xf]
    %v148 = vld [vmem:[#allocation5 + $0x160] sm:$0xf]
    %v149 = vld [vmem:[#allocation5 + $0x164] sm:$0xf]
    %v150 = vld [vmem:[#allocation5 + $0x168] sm:$0xf]
    %v151 = vld [vmem:[%s2] sm:$0x1]
    %v153 = vlaneseq
    %v154 = vshrl.u32 %v153, 7
    %v155 = vsub.s32 0, %v154
    %v156 = vrot.slane %v151, %v155
    %v249 = vunpack.c.l.b16 %v60
    %v250 = vunpack.c.l.b16 %v61
    %v251 = vunpack.c.l.b16 %v62
    %v252 = vunpack.c.l.b16 %v63
    %v253 = vunpack.c.l.b16 %v64
    %v254 = vunpack.c.l.b16 %v65
    %v255 = vunpack.c.l.b16 %v66
    %v256 = vunpack.c.l.b16 %v67
    %v257 = vunpack.c.l.b16 %v68
    %v258 = vunpack.c.l.b16 %v69
    %v259 = vunpack.c.l.b16 %v70
    %v260 = vunpack.c.l.b16 %v71
    %v261 = vunpack.c.l.b16 %v72
    %v262 = vunpack.c.l.b16 %v73
    %v263 = vunpack.c.l.b16 %v74
    %v264 = vunpack.c.l.b16 %v75
    %v265 = vunpack.c.l.b16 %v76
    %v266 = vunpack.c.l.b16 %v77
    %v267 = vunpack.c.l.b16 %v78
    %v268 = vunpack.c.l.b16 %v79
    %v269 = vunpack.c.l.b16 %v80
    %v270 = vunpack.c.l.b16 %v81
    %v271 = vunpack.c.l.b16 %v82
    %v272 = vunpack.c.l.b16 %v83
    %v273 = vunpack.c.l.b16 %v84
    %v274 = vunpack.c.l.b16 %v85
    %v275 = vunpack.c.l.b16 %v86
    %v276 = vunpack.c.l.b16 %v87
    %v277 = vunpack.c.l.b16 %v88
    %v278 = vunpack.c.l.b16 %v89
    %v279 = vunpack.c.l.b16 %v90
    %v280 = vunpack.c.l.b16 %v91
    %v281 = vunpack.c.l.b16 %v92
    %v282 = vunpack.c.l.b16 %v93
    %v283 = vunpack.c.l.b16 %v94
    %v284 = vunpack.c.l.b16 %v95
    %v285 = vunpack.c.l.b16 %v96
    %v286 = vunpack.c.l.b16 %v97
    %v287 = vunpack.c.l.b16 %v98
    %v288 = vunpack.c.l.b16 %v99
    %v289 = vunpack.c.l.b16 %v100
    %v290 = vunpack.c.l.b16 %v101
    %v291 = vunpack.c.l.b16 %v102
    %v292 = vunpack.c.l.b16 %v103
    %v293 = vunpack.c.l.b16 %v104
    %v294 = vunpack.c.l.b16 %v105
    %v295 = vunpack.c.l.b16 %v106
    %v296 = vunpack.c.l.b16 %v107
    %v297 = vunpack.c.l.b16 %v108
    %v298 = vunpack.c.l.b16 %v109
    %v299 = vunpack.c.l.b16 %v110
    %v300 = vunpack.c.l.b16 %v111
    %v301 = vunpack.c.l.b16 %v112
    %v302 = vunpack.c.l.b16 %v113
    %v303 = vunpack.c.l.b16 %v114
    %v304 = vunpack.c.l.b16 %v115
    %v305 = vunpack.c.l.b16 %v116
    %v306 = vunpack.c.l.b16 %v117
    %v307 = vunpack.c.l.b16 %v118
    %v308 = vunpack.c.l.b16 %v119
    %v309 = vunpack.c.l.b16 %v120
    %v310 = vunpack.c.l.b16 %v121
    %v311 = vunpack.c.l.b16 %v122
    %v312 = vunpack.c.l.b16 %v123
    %v313 = vunpack.c.l.b16 %v124
    %v314 = vunpack.c.l.b16 %v125
    %v315 = vunpack.c.l.b16 %v126
    %v316 = vunpack.c.l.b16 %v127
    %v317 = vunpack.c.l.b16 %v128
    %v318 = vunpack.c.l.b16 %v129
    %v319 = vunpack.c.l.b16 %v130
    %v320 = vunpack.c.l.b16 %v131
    %v321 = vunpack.c.l.b16 %v132
    %v322 = vunpack.c.l.b16 %v133
    %v323 = vunpack.c.l.b16 %v134
    %v324 = vunpack.c.l.b16 %v135
    %v325 = vunpack.c.l.b16 %v136
    %v326 = vunpack.c.l.b16 %v137
    %v327 = vunpack.c.l.b16 %v138
    %v328 = vunpack.c.l.b16 %v139
    %v329 = vunpack.c.l.b16 %v140
    %v330 = vunpack.c.l.b16 %v141
    %v331 = vunpack.c.l.b16 %v142
    %v332 = vunpack.c.l.b16 %v143
    %v333 = vunpack.c.l.b16 %v144
    %v334 = vunpack.c.l.b16 %v145
    %v335 = vunpack.c.l.b16 %v146
    %v336 = vunpack.c.l.b16 %v147
    %v337 = vunpack.c.l.b16 %v148
    %v338 = vunpack.c.l.b16 %v149
    %v339 = vunpack.c.l.b16 %v150
    %v340 = vpack.c.b16 %v250, %v249
    %v341 = vpack.c.b16 %v252, %v251
    %v342 = vpack.c.b16 %v254, %v253
    %v343 = vpack.c.b16 %v256, %v255
    %v344 = vpack.c.b16 %v258, %v257
    %v345 = vpack.c.b16 %v260, %v259
    %v346 = vpack.c.b16 %v262, %v261
    %v347 = vpack.c.b16 %v264, %v263
    %v348 = vpack.c.b16 %v266, %v265
    %v349 = vpack.c.b16 %v268, %v267
    %v350 = vpack.c.b16 %v270, %v269
    %v351 = vpack.c.b16 %v272, %v271
    %v352 = vpack.c.b16 %v274, %v273
    %v353 = vpack.c.b16 %v276, %v275
    %v354 = vpack.c.b16 %v278, %v277
    %v355 = vpack.c.b16 %v280, %v279
    %v356 = vpack.c.b16 %v282, %v281
    %v357 = vpack.c.b16 %v284, %v283
    %v358 = vpack.c.b16 %v286, %v285
    %v359 = vpack.c.b16 %v288, %v287
    %v360 = vpack.c.b16 %v290, %v289
    %v361 = vpack.c.b16 %v292, %v291
    %v362 = vpack.c.b16 %v294, %v293
    %v363 = vpack.c.b16 %v296, %v295
    %v364 = vpack.c.b16 %v298, %v297
    %v365 = vpack.c.b16 %v300, %v299
    %v366 = vpack.c.b16 %v302, %v301
    %v367 = vpack.c.b16 %v304, %v303
    %v368 = vpack.c.b16 %v306, %v305
    %v369 = vpack.c.b16 %v308, %v307
    %v370 = vpack.c.b16 %v310, %v309
    %v371 = vpack.c.b16 %v312, %v311
    %v372 = vpack.c.b16 %v314, %v313
    %v373 = vpack.c.b16 %v316, %v315
    %v374 = vpack.c.b16 %v318, %v317
    %v375 = vpack.c.b16 %v320, %v319
    %v376 = vpack.c.b16 %v322, %v321
    %v377 = vpack.c.b16 %v324, %v323
    %v378 = vpack.c.b16 %v326, %v325
    %v379 = vpack.c.b16 %v328, %v327
    %v380 = vpack.c.b16 %v330, %v329
    %v381 = vpack.c.b16 %v332, %v331
    %v382 = vpack.c.b16 %v334, %v333
    %v383 = vpack.c.b16 %v336, %v335
    %v384 = vpack.c.b16 %v338, %v337
    %v385 = vpack.c.b16 %v339, %v339
    %vm431 = vcmask 719872
    %v433 = vsel %vm431, %v59, 0
    %vm435 = vcmask 1043456
    %v437 = vsel %vm435, %v385, 0
    %439 = vmatprep.subr.bf16.mxu0 0
    %440 = vmatpush1.bf16.msra.mxu0 %v347
    %441 = vmatprep.subr.bf16.mxu0 0
    %442 = vmatpush1.bf16.msra.mxu0 %v346
    %443 = vmatprep.subr.bf16.mxu0 0
    %444 = vmatpush1.bf16.msra.mxu0 %v345
    %445 = vmatprep.subr.bf16.mxu0 0
    %446 = vmatpush1.bf16.msra.mxu0 %v344
    %447 = vmatprep.subr.bf16.mxu0 0
    %448 = vmatpush1.bf16.msra.mxu0 %v343
    %449 = vmatprep.subr.bf16.mxu0 0
    %450 = vmatpush1.bf16.msra.mxu0 %v342
    %451 = vmatprep.subr.bf16.mxu0 0
    %452 = vmatpush1.bf16.msra.mxu0 %v341
    %453 = vmatprep.subr.bf16.mxu0 0
    %454 = vmatpush1.bf16.msra.mxu0 %v340
    %455 = vmatprep.subr.bf16.mxu0 0
    %456 = vmatpush2.bf16.msra.mxu0 %v355
    %457 = vmatprep.subr.bf16.mxu0 0
    %458 = vmatpush2.bf16.msra.mxu0 %v354
    %459 = vmatprep.subr.bf16.mxu0 0
    %460 = vmatpush2.bf16.msra.mxu0 %v353
    %461 = vmatprep.subr.bf16.mxu0 0
    %462 = vmatpush2.bf16.msra.mxu0 %v352
    %463 = vmatprep.subr.bf16.mxu0 0
    %464 = vmatpush2.bf16.msra.mxu0 %v351
    %465 = vmatprep.subr.bf16.mxu0 0
    %466 = vmatpush2.bf16.msra.mxu0 %v350
    %467 = vmatprep.subr.bf16.mxu0 0
    %468 = vmatpush2.bf16.msra.mxu0 %v349
    %469 = vmatprep.subr.bf16.mxu0 0
    %470 = vmatpush2.bf16.msra.mxu0 %v348
    %471 = vmatprep.mubr.bf16.mxu0 %v55
    %472 = vmatmul.mubr.bf16.gmra.mxu0 %v54
    %v473 = vpop.f32.mrf.mxu0
    %v474 = vadd.f32 %v156, %v473
    %v475 = vpop.f32.mrf.mxu0
    %v476 = vpop.f32.mrf.mxu0
    %v477 = vpop.f32.mrf.mxu0
    %478 = vdwg.mxu0
    %479 = vmatprep.subr.bf16.mxu0 0
    %480 = vmatpush1.bf16.msra.mxu0 %v363
    %481 = vmatprep.subr.bf16.mxu0 0
    %482 = vmatpush1.bf16.msra.mxu0 %v362
    %483 = vmatprep.subr.bf16.mxu0 0
    %484 = vmatpush1.bf16.msra.mxu0 %v361
    %485 = vmatprep.subr.bf16.mxu0 0
    %486 = vmatpush1.bf16.msra.mxu0 %v360
    %487 = vmatprep.subr.bf16.mxu0 0
    %488 = vmatpush1.bf16.msra.mxu0 %v359
    %489 = vmatprep.subr.bf16.mxu0 0
    %490 = vmatpush1.bf16.msra.mxu0 %v358
    %491 = vmatprep.subr.bf16.mxu0 0
    %492 = vmatpush1.bf16.msra.mxu0 %v357
    %493 = vmatprep.subr.bf16.mxu0 0
    %494 = vmatpush1.bf16.msra.mxu0 %v356
    %495 = vmatprep.subr.bf16.mxu0 0
    %496 = vmatpush2.bf16.msra.mxu0 %v371
    %497 = vmatprep.subr.bf16.mxu0 0
    %498 = vmatpush2.bf16.msra.mxu0 %v370
    %499 = vmatprep.subr.bf16.mxu0 0
    %500 = vmatpush2.bf16.msra.mxu0 %v369
    %501 = vmatprep.subr.bf16.mxu0 0
    %502 = vmatpush2.bf16.msra.mxu0 %v368
    %503 = vmatprep.subr.bf16.mxu0 0
    %504 = vmatpush2.bf16.msra.mxu0 %v367
    %505 = vmatprep.subr.bf16.mxu0 0
    %506 = vmatpush2.bf16.msra.mxu0 %v366
    %507 = vmatprep.subr.bf16.mxu0 0
    %508 = vmatpush2.bf16.msra.mxu0 %v365
    %509 = vmatprep.subr.bf16.mxu0 0
    %510 = vmatpush2.bf16.msra.mxu0 %v364
    %511 = vmatprep.mubr.bf16.mxu0 %v57
    %512 = vmatmul.mubr.bf16.gmra.mxu0 %v56
    %v513 = vpop.f32.mrf.mxu0
    %v514 = vadd.f32 %v474, %v513
    %v515 = vpop.f32.mrf.mxu0
    %v516 = vpop.f32.mrf.mxu0
    %v517 = vpop.f32.mrf.mxu0
    %518 = vdwg.mxu0
    %519 = vmatprep.subr.bf16.mxu0 0
    %520 = vmatpush1.bf16.msra.mxu0 %v379
    %521 = vmatprep.subr.bf16.mxu0 0
    %522 = vmatpush1.bf16.msra.mxu0 %v378
    %523 = vmatprep.subr.bf16.mxu0 0
    %524 = vmatpush1.bf16.msra.mxu0 %v377
    %525 = vmatprep.subr.bf16.mxu0 0
    %526 = vmatpush1.bf16.msra.mxu0 %v376
    %527 = vmatprep.subr.bf16.mxu0 0
    %528 = vmatpush1.bf16.msra.mxu0 %v375
    %529 = vmatprep.subr.bf16.mxu0 0
    %530 = vmatpush1.bf16.msra.mxu0 %v374
    %531 = vmatprep.subr.bf16.mxu0 0
    %532 = vmatpush1.bf16.msra.mxu0 %v373
    %533 = vmatprep.subr.bf16.mxu0 0
    %534 = vmatpush1.bf16.msra.mxu0 %v372
    %535 = vmatprep.subr.bf16.mxu0 0
    %536 = vmatpush2.bf16.msra.mxu0 0
    %537 = vmatprep.subr.bf16.mxu0 0
    %538 = vmatpush2.bf16.msra.mxu0 0
    %539 = vmatprep.subr.bf16.mxu0 0
    %540 = vmatpush2.bf16.msra.mxu0 %v437
    %541 = vmatprep.subr.bf16.mxu0 0
    %542 = vmatpush2.bf16.msra.mxu0 %v384
    %543 = vmatprep.subr.bf16.mxu0 0
    %544 = vmatpush2.bf16.msra.mxu0 %v383
    %545 = vmatprep.subr.bf16.mxu0 0
    %546 = vmatpush2.bf16.msra.mxu0 %v382
    %547 = vmatprep.subr.bf16.mxu0 0
    %548 = vmatpush2.bf16.msra.mxu0 %v381
    %549 = vmatprep.subr.bf16.mxu0 0
    %550 = vmatpush2.bf16.msra.mxu0 %v380
    %551 = vmatprep.mubr.bf16.mxu0 %v433
    %552 = vmatmul.mubr.bf16.gmra.mxu0 %v58
    %v553 = vpop.f32.mrf.mxu0
    %v554 = vadd.f32 %v514, %v553
    %v555 = vpop.f32.mrf.mxu0
    %v556 = vpop.f32.mrf.mxu0
    %v557 = vpop.f32.mrf.mxu0
    %558 = vdwg.mxu0
    %v559 = vmul.f32 %v554, 0.01
    %v560 = vmax.f32 %v554, %v559
    %v561 = vld [vmem:[%s3] sm:$0xff]
    %v562 = vld [vmem:[%s4] sm:$0xff]
    %564 = vset.pattern.permute.xlu0 0
    %565 = vperm.xlu0 %564, %v562
    %v566 = vpop.permute.xlu0 %565
    %568 = vmatprep.subr.mxu0 0.0
    %569 = vmatpush1.xpose.msra.mxu0 0.0
    %570 = vmatprep.subr.mxu0 0.0
    %571 = vmatpush1.xpose.msra.mxu0 0.0
    %572 = vmatprep.subr.mxu0 0.0
    %573 = vmatpush1.xpose.msra.mxu0 0.0
    %574 = vmatprep.subr.mxu0 0.0
    %575 = vmatpush1.xpose.msra.mxu0 0.0
    %576 = vmatprep.subr.mxu0 0.0
    %577 = vmatpush1.xpose.msra.mxu0 0.0
    %578 = vmatprep.subr.mxu0 0.0
    %579 = vmatpush1.xpose.msra.mxu0 0.0
    %580 = vmatprep.subr.mxu0 0.0
    %581 = vmatpush1.xpose.msra.mxu0 0.0
    %582 = vmatprep.subr.mxu0 0.0
    %583 = vmatpush1.xpose.msra.mxu0 0.0
    %584 = vmatprep.subr.mxu0 0.0
    %585 = vmatpush1.xpose.msra.mxu0 0.0
    %586 = vmatprep.subr.mxu0 0.0
    %587 = vmatpush1.xpose.msra.mxu0 0.0
    %588 = vmatprep.subr.mxu0 0.0
    %589 = vmatpush1.xpose.msra.mxu0 0.0
    %590 = vmatprep.subr.mxu0 0.0
    %591 = vmatpush1.xpose.msra.mxu0 0.0
    %592 = vmatprep.subr.mxu0 0.0
    %593 = vmatpush1.xpose.msra.mxu0 0.0
    %594 = vmatprep.subr.mxu0 0.0
    %595 = vmatpush1.xpose.msra.mxu0 0.0
    %596 = vmatprep.subr.mxu0 0.0
    %597 = vmatpush1.xpose.msra.mxu0 0.0
    %598 = vmatprep.subr.mxu0 0.0
    %599 = vmatpush1.xpose.msra.mxu0 %v560
    %600 = vmatprep.subr.mxu0 0.0
    %601 = vmatpush2.xpose.msra.mxu0 0.0
    %602 = vmatprep.subr.mxu0 0.0
    %603 = vmatpush2.xpose.msra.mxu0 0.0
    %604 = vmatprep.subr.mxu0 0.0
    %605 = vmatpush2.xpose.msra.mxu0 0.0
    %606 = vmatprep.subr.mxu0 0.0
    %607 = vmatpush2.xpose.msra.mxu0 0.0
    %608 = vmatprep.subr.mxu0 0.0
    %609 = vmatpush2.xpose.msra.mxu0 0.0
    %610 = vmatprep.subr.mxu0 0.0
    %611 = vmatpush2.xpose.msra.mxu0 0.0
    %612 = vmatprep.subr.mxu0 0.0
    %613 = vmatpush2.xpose.msra.mxu0 0.0
    %614 = vmatprep.subr.mxu0 0.0
    %615 = vmatpush2.xpose.msra.mxu0 0.0
    %616 = vmatprep.subr.mxu0 0.0
    %617 = vmatpush2.xpose.msra.mxu0 0.0
    %618 = vmatprep.subr.mxu0 0.0
    %619 = vmatpush2.xpose.msra.mxu0 0.0
    %620 = vmatprep.subr.mxu0 0.0
    %621 = vmatpush2.xpose.msra.mxu0 0.0
    %622 = vmatprep.subr.mxu0 0.0
    %623 = vmatpush2.xpose.msra.mxu0 0.0
    %624 = vmatprep.subr.mxu0 0.0
    %625 = vmatpush2.xpose.msra.mxu0 0.0
    %626 = vmatprep.subr.mxu0 0.0
    %627 = vmatpush2.xpose.msra.mxu0 0.0
    %628 = vmatprep.subr.mxu0 0.0
    %629 = vmatpush2.xpose.msra.mxu0 0.0
    %630 = vmatprep.subr.mxu0 0.0
    %631 = vmatpush2.xpose.msra.mxu0 0.0
    %632 = vmatprep.mubr.f32.mxu0 0.0
    %633 = vmatmul.mubr.f32.gmra.mxu0 %v561
    %v634 = vpop.f32.mrf.mxu0
    %v635 = vadd.f32 %v566, %v634
    %v636 = vpop.f32.mrf.mxu0
    %637 = vdwg.mxu0
    %vm638 = vcmask 64512
    %639 = vst.msk [vmem:[#allocation7] sm:$0xff] %vm638, %v635
    // Predicated region
    $region30: #{tpu_custom_call.1} parent=1 // pred_check
      _
    $region31: #{tpu_custom_call.1} parent=1 // pred_check_branch
      %641 = sbr.rel (0) target = $region33
    $region32: #{tpu_custom_call.1} parent=1 // pred_region
      %s643 = ssub.s32 128, 128
      %644 = vsyncadd [#allocation4], %s643
      %s646 = sshll.u32 [#allocation7], 4
      %s647 = int_to_ptr.vmem [resolvable:$true] %s646
      %649 = dma.vmem_to_hbm [thread:$0]  %s647, 128, %s5, [#allocation4]
    $region33: #{tpu_custom_call.1} parent=1 // pred_fallthru
      _
    // Predicated region
    $region34: #{tpu_custom_call.1} parent=1 // pred_check
      _
    $region35: #{tpu_custom_call.1} parent=1 // pred_check_branch
      %651 = sbr.rel (0) target = $region37
    $region36: #{tpu_custom_call.1} parent=1 // pred_region
      %652 = dma.done [#allocation4], 128
    $region37: #{tpu_custom_call.1} parent=1 // pred_fallthru
      _
    %653 = vsyncpa [#allocation3], 1
    %654 = vsyncpa [#allocation6], 1
    %655 = vsyncpa [#allocation4], 1

</llo_original>
